<compile_context>
chip_gen: v7x
topology: tpu7x:2x2x1
jax: 0.10.0
libtpu: 0.0.40
codegen_flags: <defaults>
</compile_context>

<pallas_src>
import functools
import math

import numpy as np
import jax
import jax.numpy as jnp
from jax.experimental import pallas as pl
from jax.experimental.pallas import tpu as pltpu

N_CLASSES = 11
_EPS = 1e-5
_LEAK = 1.0 / 128.0


def _leaky128(x):
    # F.leaky_relu(x, 1/128)
    return jnp.where(x > 0, x, x * _LEAK)


def _fsdd_kernel(nd, bias_rows, bands_ref, wpack_ref, spack_ref, out_ref):
    # bands_ref: (B, T, NB) f32   (wrapper already did the NCT -> NTC transpose)
    # wpack_ref: (10*NB, 3*NB) bf16   rows [0,NB)=ff1.w, [NB,4NB)=ff2.w, [4NB,10NB)=lin_out.w
    # spack_ref: (*, 3*NB) f32        rows [0,nd)=4*W_rc diagonals, then b1 / b2 / bo
    B, T, NB = bands_ref.shape
    r_b1, r_b2, r_bo = bias_rows

    x = bands_ref[...]                                        # (B, T, NB) f32

    # --- InstanceNorm1d(n_bands): per (batch, band) stats over time (axis=1) ----
    mu = jnp.mean(x, axis=1, keepdims=True)
    var = jnp.mean((x - mu) ** 2, axis=1, keepdims=True)
    nb = (x - mu) * jax.lax.rsqrt(var + _EPS)                 # (B, T, NB)

    # layout-preserving collapses: rows ordered (b*T + t)
    bands_flat = x.reshape(B * T, NB)
    nbands_flat = nb.reshape(B * T, NB)

    # --- static slices into the packed parameter slabs (8/16-aligned rows) ------
    w1 = wpack_ref[0:NB, 0:3 * NB]                            # bf16 (NB, 3NB)
    w2 = wpack_ref[NB:4 * NB, 0:2 * NB]                       # bf16 (3NB, 2NB)
    wo = wpack_ref[4 * NB:10 * NB, 0:N_CLASSES]               # bf16 (6NB, NC)
    b1 = spack_ref[r_b1:r_b1 + 1, 0:3 * NB]                   # f32 (1, 3NB)
    b2 = spack_ref[r_b2:r_b2 + 1, 0:2 * NB]                   # f32 (1, 2NB)
    bo = spack_ref[r_bo:r_bo + 1, 0:N_CLASSES]                # f32 (1, NC)
    d4 = spack_ref[0:nd, 0:NB]                                # 4 * wrapped diagonals
    d4rows = [d4[i:i + 1, :] for i in range(nd)]              # hoisted out of t-loop

    # --- LowBit_RC reservoir: f_t = clamp(4*(f_{t-1} @ W_rc + x_t), -1, 1) ------
    # W_rc is cyclic-multiplex banded (nonzero only on wrapped diagonals s=1..nd):
    #   f @ W_rc = sum_s roll_left_s(f) * diag_s        (exact decomposition)
    # The 4x slope is folded into nb4 and the pre-scaled diagonals, so each serial
    # step is only roll/mul/add/clip on the VPU -- no MXU on the dependency chain.
    nb4 = nb * 4.0
    feats = jnp.zeros((B, NB), jnp.float32)
    rc_steps = []
    # NOTE: static unroll keeps ~T live vregs; if T grows past ~32-48, switch to
    # accumulating the rc contribution to the output dot per step instead.
    for t in range(T):
        acc = nb4[:, t, :]                                    # (B, NB)
        for i in range(nd):
            s = i + 1
            # roll-left by s lanes (NB not a multiple of 128 -> slice+concat form)
            rolled = jnp.concatenate([feats[:, s:], feats[:, :s]], axis=1)
            acc = acc + rolled * d4rows[i]
        feats = jnp.clip(acc, -1.0, 1.0)
        rc_steps.append(feats)                                # stays in vregs
    rc_flat = jnp.stack(rc_steps, axis=1).reshape(B * T, NB)  # rows (b*T + t)

    # --- two-layer FF on the whole flattened slab: bf16 MXU dots, f32 accum -----
    h1 = _leaky128(jnp.dot(nbands_flat.astype(jnp.bfloat16), w1,
                           preferred_element_type=jnp.float32) + b1)
    ff = _leaky128(jnp.dot(h1.astype(jnp.bfloat16), w2,
                           preferred_element_type=jnp.float32) + b2)      # (B*T, 2NB)

    # --- output linear: lane-concat all features -> one (B*T, 6NB)@(6NB, NC) ----
    allfeat = jnp.concatenate(
        [bands_flat, nbands_flat, ff, rc_flat, _leaky128(rc_flat)], axis=1)
    logits = jnp.dot(allfeat.astype(jnp.bfloat16), wo,
                     preferred_element_type=jnp.float32) + bo             # (B*T, NC)

    # --- BatchNorm1d(N_CLASSES), training mode, identity affine ------------------
    mu_c = jnp.mean(logits, axis=0, keepdims=True)
    var_c = jnp.mean((logits - mu_c) ** 2, axis=0, keepdims=True)
    act = _leaky128((logits - mu_c) * jax.lax.rsqrt(var_c + _EPS))        # (B*T, NC)

    # --- mean over time per batch -------------------------------------------------
    out_ref[...] = jnp.mean(act.reshape(B, T, N_CLASSES), axis=1)         # (B, NC)


def fsdd_pipeline_v8(bands_nct, params):
    """bands_nct: (B, n_bands, T) float32 (PyTorch NCT layout)."""
    B, NB, T = bands_nct.shape
    nd = int(params["nd"])
    bias_rows = tuple(int(r) for r in params["bias_rows"])
    # layout change done once on the wrapper side (review item 1)
    bands_btc = jnp.transpose(bands_nct.astype(jnp.float32), (0, 2, 1))   # (B, T, NB)

    vmem = pl.BlockSpec(memory_space=pltpu.MemorySpace.VMEM)
    kernel = functools.partial(_fsdd_kernel, nd, bias_rows)
    return pl.pallas_call(
        kernel,
        out_shape=jax.ShapeDtypeStruct((B, N_CLASSES), jnp.float32),
        in_specs=[vmem, vmem, vmem],
        out_specs=vmem,
    )(bands_btc, params["wpack"], params["spack"])


def init_params(n_bands, n_bits, spec_rad, degree, seed=69):
    """Deterministic synthetic parameter init (shapes match the torch module)."""
    n = n_bands
    nd = degree - 1
    rng = np.random.default_rng(seed)

    # cyclic multiplex mask: mask[r, c] = 1 iff (r - c) mod n in {1, ..., degree-1}
    mask = np.zeros((n, n), dtype=bool)
    for i in range(1, degree):
        mask |= np.roll(np.eye(n, dtype=bool), i, axis=0)
    # TODO(synk): the LFSR class is not provided in the reference source; emulate its
    # fixed-point-shift values with deterministic signed powers of two.
    n_vals = int(mask.sum())
    signs = rng.integers(0, 2, size=n_vals) * 2 - 1
    shifts = rng.integers(1, n_bits + 1, size=n_vals)
    A = np.zeros((n, n), dtype=np.float64)
    A[mask] = signs.astype(np.float64) * (2.0 ** (-shifts.astype(np.float64)))
    if spec_rad > 0:
        # mirrors torch: eigvals(A)[0].abs() (first eigenvalue, as in the module)
        A = spec_rad * A / np.abs(np.linalg.eigvals(A)[0])

    # banded-diagonal view of the cyclic-multiplex matrix: diag_s[c] = A[(c+s)%n, c]
    idx = np.arange(n)
    diags = np.stack([A[(idx + s) % n, idx] for s in range(1, degree)], axis=0)  # (nd, n)

    key = jax.random.PRNGKey(seed)

    def linear(k, fan_in, fan_out):
        kw, kb = jax.random.split(k)
        bound = 1.0 / math.sqrt(fan_in)
        w = jax.random.uniform(kw, (fan_in, fan_out), jnp.float32, -bound, bound)
        b = jax.random.uniform(kb, (1, fan_out), jnp.float32, -bound, bound)
        return w, b

    k1, k2, k3 = jax.random.split(key, 3)
    w1, b1 = linear(k1, n, 3 * n)          # ff1
    w2, b2 = linear(k2, 3 * n, 2 * n)      # ff2
    wo, bo = linear(k3, 6 * n, N_CLASSES)  # lin_out (stored transposed)

    # ---- pack parameters for the kernel: 2 DMAs instead of 8 --------------------
    W = 3 * n                                       # slab width (widest parameter)
    # bf16 matmul weights; row offsets 0 / n / 4n are multiples of 16 (bf16 tile)
    wpack = jnp.concatenate([
        w1,                                                    # rows [0, n)
        jnp.pad(w2, ((0, 0), (0, W - 2 * n))),                 # rows [n, 4n)
        jnp.pad(wo, ((0, 0), (0, W - N_CLASSES))),             # rows [4n, 10n)
    ], axis=0).astype(jnp.bfloat16)

    nd_pad = max(8, ((nd + 7) // 8) * 8)            # keep bias rows 8-aligned
    spack = np.zeros((nd_pad + 24, W), np.float32)
    spack[0:nd, 0:n] = 4.0 * diags                  # clip slope folded in (exact: *4)
    spack[nd_pad, 0:3 * n] = np.asarray(b1[0])
    spack[nd_pad + 8, 0:2 * n] = np.asarray(b2[0])
    spack[nd_pad + 16, 0:N_CLASSES] = np.asarray(bo[0])
    bias_rows = (nd_pad, nd_pad + 8, nd_pad + 16)

    return dict(
        nd=nd, bias_rows=bias_rows,
        wpack=wpack, spack=jnp.asarray(spack),
        # f32 originals, used by the pure-JAX reference path:
        w_rc=jnp.asarray(A, jnp.float32),
        w1=w1, b1=b1, w2=w2, b2=b2, wo=wo, bo=bo,
    )


def reference_forward(bands_nct, params):
    """Pure-JAX reference mirroring the PyTorch forward (NCT layout, f32 math)."""
    bands = bands_nct.astype(jnp.float32)                         # (B, C, T)
    mu = jnp.mean(bands, axis=-1, keepdims=True)
    var = jnp.mean((bands - mu) ** 2, axis=-1, keepdims=True)
    nbands = (bands - mu) / jnp.sqrt(var + _EPS)

    B, C, T = bands.shape
    feats = jnp.zeros((B, C), jnp.float32)
    outs = []
    for t in range(T):
        feats = jnp.clip(4.0 * (feats @ params["w_rc"] + nbands[:, :, t]), -1.0, 1.0)
        outs.append(feats)
    rc = jnp.stack(outs, axis=-1)                                 # (B, C, T)
    nl_tdyn = jnp.concatenate([rc, _leaky128(rc)], axis=1)

    def mtmt(x, w, b):
        return jnp.swapaxes(jnp.swapaxes(x, -1, -2) @ w + b, -1, -2)

    ff = _leaky128(mtmt(_leaky128(mtmt(nbands, params["w1"], params["b1"])),
                        params["w2"], params["b2"]))
    stacked = jnp.concatenate([bands, nbands, ff, nl_tdyn], axis=1)
    logits = mtmt(stacked, params["wo"], params["bo"])            # (B, NC, T)
    mu_c = jnp.mean(logits, axis=(0, 2), keepdims=True)
    var_c = jnp.mean((logits - mu_c) ** 2, axis=(0, 2), keepdims=True)
    act = _leaky128((logits - mu_c) / jnp.sqrt(var_c + _EPS))
    return jnp.mean(act, axis=-1)                                 # (B, NC)


if __name__ == "__main__":
    n_bands, n_bits, spec_rad, degree = 16, 4, 0.9, 3
    B, T = 2, 8

    params = init_params(n_bands, n_bits, spec_rad, degree, seed=69)
    bands = jax.random.normal(jax.random.PRNGKey(0), (B, n_bands, T), jnp.float32)

    out = jax.block_until_ready(fsdd_pipeline_v8(bands, params))
    assert out.shape == (B, N_CLASSES)

    ref = jax.block_until_ready(reference_forward(bands, params))
    # Tolerance sized for bf16 MXU dot inputs (f32 accumulate): worst-case error on
    # the BatchNorm-normalized activations is ~1e-2 before the time-mean.
    np.testing.assert_allclose(np.asarray(out), np.asarray(ref), atol=2e-2, rtol=2e-2)

    print("KERNEL_OK")
</pallas_src>

<mosaic_0001>
module attributes {stable_mosaic.version = 11 : i64} {
  func.func @_fsdd_kernel(%arg0: memref<2x8x16xf32, #tpu.memory_space<vmem>>, %arg1: memref<160x48xbf16, #tpu.memory_space<vmem>>, %arg2: memref<32x48xf32, #tpu.memory_space<vmem>>, %arg3: memref<2x11xf32, #tpu.memory_space<vmem>>) attributes {dimension_semantics = [], scalar_prefetch = 0 : i64, scratch_operands = 0 : i64, tpu.core_type = #tpu.core_type<tc>} {
    %c0 = arith.constant 0 : index
    %c0_0 = arith.constant 0 : index
    %c0_1 = arith.constant 0 : index
    %0 = vector.load %arg0[%c0, %c0_0, %c0_1] : memref<2x8x16xf32, #tpu.memory_space<vmem>>, vector<2x8x16xf32>
    %cst = arith.constant dense<0.000000e+00> : vector<2x16xf32>
    %1 = vector.multi_reduction <add>, %0, %cst [1] : vector<2x8x16xf32> to vector<2x16xf32>
    %2 = vector.shape_cast %1 : vector<2x16xf32> to vector<2x1x16xf32>
    %cst_2 = arith.constant 8.000000e+00 : f32
    %3 = vector.broadcast %cst_2 : f32 to vector<2x1x16xf32>
    %4 = arith.divf %2, %3 : vector<2x1x16xf32>
    %5 = vector.broadcast %4 : vector<2x1x16xf32> to vector<2x8x16xf32>
    %6 = arith.subf %0, %5 : vector<2x8x16xf32>
    %7 = arith.mulf %6, %6 : vector<2x8x16xf32>
    %cst_3 = arith.constant dense<0.000000e+00> : vector<2x16xf32>
    %8 = vector.multi_reduction <add>, %7, %cst_3 [1] : vector<2x8x16xf32> to vector<2x16xf32>
    %9 = vector.shape_cast %8 : vector<2x16xf32> to vector<2x1x16xf32>
    %cst_4 = arith.constant 8.000000e+00 : f32
    %10 = vector.broadcast %cst_4 : f32 to vector<2x1x16xf32>
    %11 = arith.divf %9, %10 : vector<2x1x16xf32>
    %12 = vector.broadcast %4 : vector<2x1x16xf32> to vector<2x8x16xf32>
    %13 = arith.subf %0, %12 : vector<2x8x16xf32>
    %cst_5 = arith.constant 9.99999974E-6 : f32
    %14 = vector.broadcast %cst_5 : f32 to vector<2x1x16xf32>
    %15 = arith.addf %11, %14 : vector<2x1x16xf32>
    %16 = math.rsqrt %15 : vector<2x1x16xf32>
    %17 = vector.broadcast %16 : vector<2x1x16xf32> to vector<2x8x16xf32>
    %18 = arith.mulf %13, %17 : vector<2x8x16xf32>
    %19 = vector.shape_cast %0 : vector<2x8x16xf32> to vector<16x16xf32>
    %20 = vector.shape_cast %18 : vector<2x8x16xf32> to vector<16x16xf32>
    %c0_6 = arith.constant 0 : index
    %c0_7 = arith.constant 0 : index
    %21 = vector.load %arg1[%c0_6, %c0_7] : memref<160x48xbf16, #tpu.memory_space<vmem>>, vector<16x48xbf16>
    %c16 = arith.constant 16 : index
    %c0_8 = arith.constant 0 : index
    %22 = vector.load %arg1[%c16, %c0_8] : memref<160x48xbf16, #tpu.memory_space<vmem>>, vector<48x32xbf16>
    %c64 = arith.constant 64 : index
    %c0_9 = arith.constant 0 : index
    %23 = vector.load %arg1[%c64, %c0_9] : memref<160x48xbf16, #tpu.memory_space<vmem>>, vector<96x11xbf16>
    %c8 = arith.constant 8 : index
    %c0_10 = arith.constant 0 : index
    %24 = vector.load %arg2[%c8, %c0_10] : memref<32x48xf32, #tpu.memory_space<vmem>>, vector<1x48xf32>
    %c16_11 = arith.constant 16 : index
    %c0_12 = arith.constant 0 : index
    %25 = vector.load %arg2[%c16_11, %c0_12] : memref<32x48xf32, #tpu.memory_space<vmem>>, vector<1x32xf32>
    %c24 = arith.constant 24 : index
    %c0_13 = arith.constant 0 : index
    %26 = vector.load %arg2[%c24, %c0_13] : memref<32x48xf32, #tpu.memory_space<vmem>>, vector<1x11xf32>
    %c0_14 = arith.constant 0 : index
    %c0_15 = arith.constant 0 : index
    %27 = vector.load %arg2[%c0_14, %c0_15] : memref<32x48xf32, #tpu.memory_space<vmem>>, vector<2x16xf32>
    %28 = vector.extract_strided_slice %27 {offsets = [0, 0], sizes = [1, 16], strides = [1, 1]} : vector<2x16xf32> to vector<1x16xf32>
    %29 = vector.extract_strided_slice %27 {offsets = [1, 0], sizes = [1, 16], strides = [1, 1]} : vector<2x16xf32> to vector<1x16xf32>
    %cst_16 = arith.constant 4.000000e+00 : f32
    %30 = vector.broadcast %cst_16 : f32 to vector<2x8x16xf32>
    %31 = arith.mulf %18, %30 : vector<2x8x16xf32>
    %cst_17 = arith.constant 0.000000e+00 : f32
    %32 = vector.broadcast %cst_17 : f32 to vector<2x16xf32>
    %33 = vector.extract_strided_slice %31 {offsets = [0, 0, 0], sizes = [2, 1, 16], strides = [1, 1, 1]} : vector<2x8x16xf32> to vector<2x1x16xf32>
    %34 = vector.shape_cast %33 : vector<2x1x16xf32> to vector<2x16xf32>
    %35 = vector.extract_strided_slice %32 {offsets = [0, 1], sizes = [2, 15], strides = [1, 1]} : vector<2x16xf32> to vector<2x15xf32>
    %36 = vector.extract_strided_slice %32 {offsets = [0, 0], sizes = [2, 1], strides = [1, 1]} : vector<2x16xf32> to vector<2x1xf32>
    %37 = tpu.concatenate %35, %36 in 1 : vector<2x15xf32>, vector<2x1xf32> -> vector<2x16xf32>
    %38 = vector.broadcast %28 : vector<1x16xf32> to vector<2x16xf32>
    %39 = arith.mulf %37, %38 : vector<2x16xf32>
    %40 = arith.addf %34, %39 : vector<2x16xf32>
    %41 = vector.extract_strided_slice %32 {offsets = [0, 2], sizes = [2, 14], strides = [1, 1]} : vector<2x16xf32> to vector<2x14xf32>
    %42 = vector.extract_strided_slice %32 {offsets = [0, 0], sizes = [2, 2], strides = [1, 1]} : vector<2x16xf32> to vector<2x2xf32>
    %43 = tpu.concatenate %41, %42 in 1 : vector<2x14xf32>, vector<2x2xf32> -> vector<2x16xf32>
    %44 = vector.broadcast %29 : vector<1x16xf32> to vector<2x16xf32>
    %45 = arith.mulf %43, %44 : vector<2x16xf32>
    %46 = arith.addf %40, %45 : vector<2x16xf32>
    %cst_18 = arith.constant -1.000000e+00 : f32
    %cst_19 = arith.constant 1.000000e+00 : f32
    %47 = vector.broadcast %cst_18 : f32 to vector<2x16xf32>
    %48 = arith.maximumf %47, %46 : vector<2x16xf32>
    %49 = vector.broadcast %cst_19 : f32 to vector<2x16xf32>
    %50 = arith.minimumf %49, %48 : vector<2x16xf32>
    %51 = vector.extract_strided_slice %31 {offsets = [0, 1, 0], sizes = [2, 1, 16], strides = [1, 1, 1]} : vector<2x8x16xf32> to vector<2x1x16xf32>
    %52 = vector.shape_cast %51 : vector<2x1x16xf32> to vector<2x16xf32>
    %53 = vector.extract_strided_slice %50 {offsets = [0, 1], sizes = [2, 15], strides = [1, 1]} : vector<2x16xf32> to vector<2x15xf32>
    %54 = vector.extract_strided_slice %50 {offsets = [0, 0], sizes = [2, 1], strides = [1, 1]} : vector<2x16xf32> to vector<2x1xf32>
    %55 = tpu.concatenate %53, %54 in 1 : vector<2x15xf32>, vector<2x1xf32> -> vector<2x16xf32>
    %56 = vector.broadcast %28 : vector<1x16xf32> to vector<2x16xf32>
    %57 = arith.mulf %55, %56 : vector<2x16xf32>
    %58 = arith.addf %52, %57 : vector<2x16xf32>
    %59 = vector.extract_strided_slice %50 {offsets = [0, 2], sizes = [2, 14], strides = [1, 1]} : vector<2x16xf32> to vector<2x14xf32>
    %60 = vector.extract_strided_slice %50 {offsets = [0, 0], sizes = [2, 2], strides = [1, 1]} : vector<2x16xf32> to vector<2x2xf32>
    %61 = tpu.concatenate %59, %60 in 1 : vector<2x14xf32>, vector<2x2xf32> -> vector<2x16xf32>
    %62 = vector.broadcast %29 : vector<1x16xf32> to vector<2x16xf32>
    %63 = arith.mulf %61, %62 : vector<2x16xf32>
    %64 = arith.addf %58, %63 : vector<2x16xf32>
    %cst_20 = arith.constant -1.000000e+00 : f32
    %cst_21 = arith.constant 1.000000e+00 : f32
    %65 = vector.broadcast %cst_20 : f32 to vector<2x16xf32>
    %66 = arith.maximumf %65, %64 : vector<2x16xf32>
    %67 = vector.broadcast %cst_21 : f32 to vector<2x16xf32>
    %68 = arith.minimumf %67, %66 : vector<2x16xf32>
    %69 = vector.extract_strided_slice %31 {offsets = [0, 2, 0], sizes = [2, 1, 16], strides = [1, 1, 1]} : vector<2x8x16xf32> to vector<2x1x16xf32>
    %70 = vector.shape_cast %69 : vector<2x1x16xf32> to vector<2x16xf32>
    %71 = vector.extract_strided_slice %68 {offsets = [0, 1], sizes = [2, 15], strides = [1, 1]} : vector<2x16xf32> to vector<2x15xf32>
    %72 = vector.extract_strided_slice %68 {offsets = [0, 0], sizes = [2, 1], strides = [1, 1]} : vector<2x16xf32> to vector<2x1xf32>
    %73 = tpu.concatenate %71, %72 in 1 : vector<2x15xf32>, vector<2x1xf32> -> vector<2x16xf32>
    %74 = vector.broadcast %28 : vector<1x16xf32> to vector<2x16xf32>
    %75 = arith.mulf %73, %74 : vector<2x16xf32>
    %76 = arith.addf %70, %75 : vector<2x16xf32>
    %77 = vector.extract_strided_slice %68 {offsets = [0, 2], sizes = [2, 14], strides = [1, 1]} : vector<2x16xf32> to vector<2x14xf32>
    %78 = vector.extract_strided_slice %68 {offsets = [0, 0], sizes = [2, 2], strides = [1, 1]} : vector<2x16xf32> to vector<2x2xf32>
    %79 = tpu.concatenate %77, %78 in 1 : vector<2x14xf32>, vector<2x2xf32> -> vector<2x16xf32>
    %80 = vector.broadcast %29 : vector<1x16xf32> to vector<2x16xf32>
    %81 = arith.mulf %79, %80 : vector<2x16xf32>
    %82 = arith.addf %76, %81 : vector<2x16xf32>
    %cst_22 = arith.constant -1.000000e+00 : f32
    %cst_23 = arith.constant 1.000000e+00 : f32
    %83 = vector.broadcast %cst_22 : f32 to vector<2x16xf32>
    %84 = arith.maximumf %83, %82 : vector<2x16xf32>
    %85 = vector.broadcast %cst_23 : f32 to vector<2x16xf32>
    %86 = arith.minimumf %85, %84 : vector<2x16xf32>
    %87 = vector.extract_strided_slice %31 {offsets = [0, 3, 0], sizes = [2, 1, 16], strides = [1, 1, 1]} : vector<2x8x16xf32> to vector<2x1x16xf32>
    %88 = vector.shape_cast %87 : vector<2x1x16xf32> to vector<2x16xf32>
    %89 = vector.extract_strided_slice %86 {offsets = [0, 1], sizes = [2, 15], strides = [1, 1]} : vector<2x16xf32> to vector<2x15xf32>
    %90 = vector.extract_strided_slice %86 {offsets = [0, 0], sizes = [2, 1], strides = [1, 1]} : vector<2x16xf32> to vector<2x1xf32>
    %91 = tpu.concatenate %89, %90 in 1 : vector<2x15xf32>, vector<2x1xf32> -> vector<2x16xf32>
    %92 = vector.broadcast %28 : vector<1x16xf32> to vector<2x16xf32>
    %93 = arith.mulf %91, %92 : vector<2x16xf32>
    %94 = arith.addf %88, %93 : vector<2x16xf32>
    %95 = vector.extract_strided_slice %86 {offsets = [0, 2], sizes = [2, 14], strides = [1, 1]} : vector<2x16xf32> to vector<2x14xf32>
    %96 = vector.extract_strided_slice %86 {offsets = [0, 0], sizes = [2, 2], strides = [1, 1]} : vector<2x16xf32> to vector<2x2xf32>
    %97 = tpu.concatenate %95, %96 in 1 : vector<2x14xf32>, vector<2x2xf32> -> vector<2x16xf32>
    %98 = vector.broadcast %29 : vector<1x16xf32> to vector<2x16xf32>
    %99 = arith.mulf %97, %98 : vector<2x16xf32>
    %100 = arith.addf %94, %99 : vector<2x16xf32>
    %cst_24 = arith.constant -1.000000e+00 : f32
    %cst_25 = arith.constant 1.000000e+00 : f32
    %101 = vector.broadcast %cst_24 : f32 to vector<2x16xf32>
    %102 = arith.maximumf %101, %100 : vector<2x16xf32>
    %103 = vector.broadcast %cst_25 : f32 to vector<2x16xf32>
    %104 = arith.minimumf %103, %102 : vector<2x16xf32>
    %105 = vector.extract_strided_slice %31 {offsets = [0, 4, 0], sizes = [2, 1, 16], strides = [1, 1, 1]} : vector<2x8x16xf32> to vector<2x1x16xf32>
    %106 = vector.shape_cast %105 : vector<2x1x16xf32> to vector<2x16xf32>
    %107 = vector.extract_strided_slice %104 {offsets = [0, 1], sizes = [2, 15], strides = [1, 1]} : vector<2x16xf32> to vector<2x15xf32>
    %108 = vector.extract_strided_slice %104 {offsets = [0, 0], sizes = [2, 1], strides = [1, 1]} : vector<2x16xf32> to vector<2x1xf32>
    %109 = tpu.concatenate %107, %108 in 1 : vector<2x15xf32>, vector<2x1xf32> -> vector<2x16xf32>
    %110 = vector.broadcast %28 : vector<1x16xf32> to vector<2x16xf32>
    %111 = arith.mulf %109, %110 : vector<2x16xf32>
    %112 = arith.addf %106, %111 : vector<2x16xf32>
    %113 = vector.extract_strided_slice %104 {offsets = [0, 2], sizes = [2, 14], strides = [1, 1]} : vector<2x16xf32> to vector<2x14xf32>
    %114 = vector.extract_strided_slice %104 {offsets = [0, 0], sizes = [2, 2], strides = [1, 1]} : vector<2x16xf32> to vector<2x2xf32>
    %115 = tpu.concatenate %113, %114 in 1 : vector<2x14xf32>, vector<2x2xf32> -> vector<2x16xf32>
    %116 = vector.broadcast %29 : vector<1x16xf32> to vector<2x16xf32>
    %117 = arith.mulf %115, %116 : vector<2x16xf32>
    %118 = arith.addf %112, %117 : vector<2x16xf32>
    %cst_26 = arith.constant -1.000000e+00 : f32
    %cst_27 = arith.constant 1.000000e+00 : f32
    %119 = vector.broadcast %cst_26 : f32 to vector<2x16xf32>
    %120 = arith.maximumf %119, %118 : vector<2x16xf32>
    %121 = vector.broadcast %cst_27 : f32 to vector<2x16xf32>
    %122 = arith.minimumf %121, %120 : vector<2x16xf32>
    %123 = vector.extract_strided_slice %31 {offsets = [0, 5, 0], sizes = [2, 1, 16], strides = [1, 1, 1]} : vector<2x8x16xf32> to vector<2x1x16xf32>
    %124 = vector.shape_cast %123 : vector<2x1x16xf32> to vector<2x16xf32>
    %125 = vector.extract_strided_slice %122 {offsets = [0, 1], sizes = [2, 15], strides = [1, 1]} : vector<2x16xf32> to vector<2x15xf32>
    %126 = vector.extract_strided_slice %122 {offsets = [0, 0], sizes = [2, 1], strides = [1, 1]} : vector<2x16xf32> to vector<2x1xf32>
    %127 = tpu.concatenate %125, %126 in 1 : vector<2x15xf32>, vector<2x1xf32> -> vector<2x16xf32>
    %128 = vector.broadcast %28 : vector<1x16xf32> to vector<2x16xf32>
    %129 = arith.mulf %127, %128 : vector<2x16xf32>
    %130 = arith.addf %124, %129 : vector<2x16xf32>
    %131 = vector.extract_strided_slice %122 {offsets = [0, 2], sizes = [2, 14], strides = [1, 1]} : vector<2x16xf32> to vector<2x14xf32>
    %132 = vector.extract_strided_slice %122 {offsets = [0, 0], sizes = [2, 2], strides = [1, 1]} : vector<2x16xf32> to vector<2x2xf32>
    %133 = tpu.concatenate %131, %132 in 1 : vector<2x14xf32>, vector<2x2xf32> -> vector<2x16xf32>
    %134 = vector.broadcast %29 : vector<1x16xf32> to vector<2x16xf32>
    %135 = arith.mulf %133, %134 : vector<2x16xf32>
    %136 = arith.addf %130, %135 : vector<2x16xf32>
    %cst_28 = arith.constant -1.000000e+00 : f32
    %cst_29 = arith.constant 1.000000e+00 : f32
    %137 = vector.broadcast %cst_28 : f32 to vector<2x16xf32>
    %138 = arith.maximumf %137, %136 : vector<2x16xf32>
    %139 = vector.broadcast %cst_29 : f32 to vector<2x16xf32>
    %140 = arith.minimumf %139, %138 : vector<2x16xf32>
    %141 = vector.extract_strided_slice %31 {offsets = [0, 6, 0], sizes = [2, 1, 16], strides = [1, 1, 1]} : vector<2x8x16xf32> to vector<2x1x16xf32>
    %142 = vector.shape_cast %141 : vector<2x1x16xf32> to vector<2x16xf32>
    %143 = vector.extract_strided_slice %140 {offsets = [0, 1], sizes = [2, 15], strides = [1, 1]} : vector<2x16xf32> to vector<2x15xf32>
    %144 = vector.extract_strided_slice %140 {offsets = [0, 0], sizes = [2, 1], strides = [1, 1]} : vector<2x16xf32> to vector<2x1xf32>
    %145 = tpu.concatenate %143, %144 in 1 : vector<2x15xf32>, vector<2x1xf32> -> vector<2x16xf32>
    %146 = vector.broadcast %28 : vector<1x16xf32> to vector<2x16xf32>
    %147 = arith.mulf %145, %146 : vector<2x16xf32>
    %148 = arith.addf %142, %147 : vector<2x16xf32>
    %149 = vector.extract_strided_slice %140 {offsets = [0, 2], sizes = [2, 14], strides = [1, 1]} : vector<2x16xf32> to vector<2x14xf32>
    %150 = vector.extract_strided_slice %140 {offsets = [0, 0], sizes = [2, 2], strides = [1, 1]} : vector<2x16xf32> to vector<2x2xf32>
    %151 = tpu.concatenate %149, %150 in 1 : vector<2x14xf32>, vector<2x2xf32> -> vector<2x16xf32>
    %152 = vector.broadcast %29 : vector<1x16xf32> to vector<2x16xf32>
    %153 = arith.mulf %151, %152 : vector<2x16xf32>
    %154 = arith.addf %148, %153 : vector<2x16xf32>
    %cst_30 = arith.constant -1.000000e+00 : f32
    %cst_31 = arith.constant 1.000000e+00 : f32
    %155 = vector.broadcast %cst_30 : f32 to vector<2x16xf32>
    %156 = arith.maximumf %155, %154 : vector<2x16xf32>
    %157 = vector.broadcast %cst_31 : f32 to vector<2x16xf32>
    %158 = arith.minimumf %157, %156 : vector<2x16xf32>
    %159 = vector.extract_strided_slice %31 {offsets = [0, 7, 0], sizes = [2, 1, 16], strides = [1, 1, 1]} : vector<2x8x16xf32> to vector<2x1x16xf32>
    %160 = vector.shape_cast %159 : vector<2x1x16xf32> to vector<2x16xf32>
    %161 = vector.extract_strided_slice %158 {offsets = [0, 1], sizes = [2, 15], strides = [1, 1]} : vector<2x16xf32> to vector<2x15xf32>
    %162 = vector.extract_strided_slice %158 {offsets = [0, 0], sizes = [2, 1], strides = [1, 1]} : vector<2x16xf32> to vector<2x1xf32>
    %163 = tpu.concatenate %161, %162 in 1 : vector<2x15xf32>, vector<2x1xf32> -> vector<2x16xf32>
    %164 = vector.broadcast %28 : vector<1x16xf32> to vector<2x16xf32>
    %165 = arith.mulf %163, %164 : vector<2x16xf32>
    %166 = arith.addf %160, %165 : vector<2x16xf32>
    %167 = vector.extract_strided_slice %158 {offsets = [0, 2], sizes = [2, 14], strides = [1, 1]} : vector<2x16xf32> to vector<2x14xf32>
    %168 = vector.extract_strided_slice %158 {offsets = [0, 0], sizes = [2, 2], strides = [1, 1]} : vector<2x16xf32> to vector<2x2xf32>
    %169 = tpu.concatenate %167, %168 in 1 : vector<2x14xf32>, vector<2x2xf32> -> vector<2x16xf32>
    %170 = vector.broadcast %29 : vector<1x16xf32> to vector<2x16xf32>
    %171 = arith.mulf %169, %170 : vector<2x16xf32>
    %172 = arith.addf %166, %171 : vector<2x16xf32>
    %cst_32 = arith.constant -1.000000e+00 : f32
    %cst_33 = arith.constant 1.000000e+00 : f32
    %173 = vector.broadcast %cst_32 : f32 to vector<2x16xf32>
    %174 = arith.maximumf %173, %172 : vector<2x16xf32>
    %175 = vector.broadcast %cst_33 : f32 to vector<2x16xf32>
    %176 = arith.minimumf %175, %174 : vector<2x16xf32>
    %177 = vector.shape_cast %50 : vector<2x16xf32> to vector<2x1x16xf32>
    %178 = vector.shape_cast %68 : vector<2x16xf32> to vector<2x1x16xf32>
    %179 = vector.shape_cast %86 : vector<2x16xf32> to vector<2x1x16xf32>
    %180 = vector.shape_cast %104 : vector<2x16xf32> to vector<2x1x16xf32>
    %181 = vector.shape_cast %122 : vector<2x16xf32> to vector<2x1x16xf32>
    %182 = vector.shape_cast %140 : vector<2x16xf32> to vector<2x1x16xf32>
    %183 = vector.shape_cast %158 : vector<2x16xf32> to vector<2x1x16xf32>
    %184 = vector.shape_cast %176 : vector<2x16xf32> to vector<2x1x16xf32>
    %185 = tpu.concatenate %177, %178, %179, %180, %181, %182, %183, %184 in 1 : vector<2x1x16xf32>, vector<2x1x16xf32>, vector<2x1x16xf32>, vector<2x1x16xf32>, vector<2x1x16xf32>, vector<2x1x16xf32>, vector<2x1x16xf32>, vector<2x1x16xf32> -> vector<2x8x16xf32>
    %186 = vector.shape_cast %185 : vector<2x8x16xf32> to vector<16x16xf32>
    %187 = arith.truncf %20 : vector<16x16xf32> to vector<16x16xbf16>
    %cst_34 = arith.constant dense<0.000000e+00> : vector<16x48xf32>
    %188 = tpu.matmul %187, %21, %cst_34 {dimension_numbers = #tpu.dot_dimension_numbers<[1], [0], [0], [1], [0, 0, 1, 1], [], []>} : vector<16x16xbf16>, vector<16x48xbf16>, vector<16x48xf32> -> vector<16x48xf32>
    %189 = vector.broadcast %24 : vector<1x48xf32> to vector<16x48xf32>
    %190 = arith.addf %188, %189 : vector<16x48xf32>
    %cst_35 = arith.constant 0.000000e+00 : f32
    %191 = vector.broadcast %cst_35 : f32 to vector<16x48xf32>
    %192 = arith.cmpf ogt, %190, %191 : vector<16x48xf32>
    %cst_36 = arith.constant 7.812500e-03 : f32
    %193 = vector.broadcast %cst_36 : f32 to vector<16x48xf32>
    %194 = arith.mulf %190, %193 : vector<16x48xf32>
    %195 = arith.select %192, %190, %194 : vector<16x48xi1>, vector<16x48xf32>
    %196 = arith.truncf %195 : vector<16x48xf32> to vector<16x48xbf16>
    %cst_37 = arith.constant dense<0.000000e+00> : vector<16x32xf32>
    %197 = tpu.matmul %196, %22, %cst_37 {dimension_numbers = #tpu.dot_dimension_numbers<[1], [0], [0], [1], [0, 0, 1, 1], [], []>} : vector<16x48xbf16>, vector<48x32xbf16>, vector<16x32xf32> -> vector<16x32xf32>
    %198 = vector.broadcast %25 : vector<1x32xf32> to vector<16x32xf32>
    %199 = arith.addf %197, %198 : vector<16x32xf32>
    %cst_38 = arith.constant 0.000000e+00 : f32
    %200 = vector.broadcast %cst_38 : f32 to vector<16x32xf32>
    %201 = arith.cmpf ogt, %199, %200 : vector<16x32xf32>
    %cst_39 = arith.constant 7.812500e-03 : f32
    %202 = vector.broadcast %cst_39 : f32 to vector<16x32xf32>
    %203 = arith.mulf %199, %202 : vector<16x32xf32>
    %204 = arith.select %201, %199, %203 : vector<16x32xi1>, vector<16x32xf32>
    %cst_40 = arith.constant 0.000000e+00 : f32
    %205 = vector.broadcast %cst_40 : f32 to vector<16x16xf32>
    %206 = arith.cmpf ogt, %186, %205 : vector<16x16xf32>
    %cst_41 = arith.constant 7.812500e-03 : f32
    %207 = vector.broadcast %cst_41 : f32 to vector<16x16xf32>
    %208 = arith.mulf %186, %207 : vector<16x16xf32>
    %209 = arith.select %206, %186, %208 : vector<16x16xi1>, vector<16x16xf32>
    %210 = tpu.concatenate %19, %20, %204, %186, %209 in 1 : vector<16x16xf32>, vector<16x16xf32>, vector<16x32xf32>, vector<16x16xf32>, vector<16x16xf32> -> vector<16x96xf32>
    %211 = arith.truncf %210 : vector<16x96xf32> to vector<16x96xbf16>
    %cst_42 = arith.constant dense<0.000000e+00> : vector<16x11xf32>
    %212 = tpu.matmul %211, %23, %cst_42 {dimension_numbers = #tpu.dot_dimension_numbers<[1], [0], [0], [1], [0, 0, 1, 1], [], []>} : vector<16x96xbf16>, vector<96x11xbf16>, vector<16x11xf32> -> vector<16x11xf32>
    %213 = vector.broadcast %26 : vector<1x11xf32> to vector<16x11xf32>
    %214 = arith.addf %212, %213 : vector<16x11xf32>
    %cst_43 = arith.constant dense<0.000000e+00> : vector<11xf32>
    %215 = vector.multi_reduction <add>, %214, %cst_43 [0] : vector<16x11xf32> to vector<11xf32>
    %216 = vector.shape_cast %215 : vector<11xf32> to vector<1x11xf32>
    %cst_44 = arith.constant 1.600000e+01 : f32
    %217 = vector.broadcast %cst_44 : f32 to vector<1x11xf32>
    %218 = arith.divf %216, %217 : vector<1x11xf32>
    %219 = vector.broadcast %218 : vector<1x11xf32> to vector<16x11xf32>
    %220 = arith.subf %214, %219 : vector<16x11xf32>
    %221 = arith.mulf %220, %220 : vector<16x11xf32>
    %cst_45 = arith.constant dense<0.000000e+00> : vector<11xf32>
    %222 = vector.multi_reduction <add>, %221, %cst_45 [0] : vector<16x11xf32> to vector<11xf32>
    %223 = vector.shape_cast %222 : vector<11xf32> to vector<1x11xf32>
    %cst_46 = arith.constant 1.600000e+01 : f32
    %224 = vector.broadcast %cst_46 : f32 to vector<1x11xf32>
    %225 = arith.divf %223, %224 : vector<1x11xf32>
    %226 = vector.broadcast %218 : vector<1x11xf32> to vector<16x11xf32>
    %227 = arith.subf %214, %226 : vector<16x11xf32>
    %cst_47 = arith.constant 9.99999974E-6 : f32
    %228 = vector.broadcast %cst_47 : f32 to vector<1x11xf32>
    %229 = arith.addf %225, %228 : vector<1x11xf32>
    %230 = math.rsqrt %229 : vector<1x11xf32>
    %231 = vector.broadcast %230 : vector<1x11xf32> to vector<16x11xf32>
    %232 = arith.mulf %227, %231 : vector<16x11xf32>
    %cst_48 = arith.constant 0.000000e+00 : f32
    %233 = vector.broadcast %cst_48 : f32 to vector<16x11xf32>
    %234 = arith.cmpf ogt, %232, %233 : vector<16x11xf32>
    %cst_49 = arith.constant 7.812500e-03 : f32
    %235 = vector.broadcast %cst_49 : f32 to vector<16x11xf32>
    %236 = arith.mulf %232, %235 : vector<16x11xf32>
    %237 = arith.select %234, %232, %236 : vector<16x11xi1>, vector<16x11xf32>
    %238 = vector.shape_cast %237 : vector<16x11xf32> to vector<2x8x11xf32>
    %cst_50 = arith.constant dense<0.000000e+00> : vector<2x11xf32>
    %239 = vector.multi_reduction <add>, %238, %cst_50 [1] : vector<2x8x11xf32> to vector<2x11xf32>
    %cst_51 = arith.constant 8.000000e+00 : f32
    %240 = vector.broadcast %cst_51 : f32 to vector<2x11xf32>
    %241 = arith.divf %239, %240 : vector<2x11xf32>
    %c0_52 = arith.constant 0 : index
    %c0_53 = arith.constant 0 : index
    %242 = vector.load %arg3[%c0_52, %c0_53] : memref<2x11xf32, #tpu.memory_space<vmem>>, vector<2x11xf32>
    tpu.vector_store %arg3[%c0_52, %c0_53], %241 {strides = array<i32>} : memref<2x11xf32, #tpu.memory_space<vmem>>, vector<2x11xf32>,
    return
  }
}

</mosaic_0001>

<llo_original>
// kernel: tpu_custom_call.1
$region0: #{tpu_custom_call.1}
  #allocation0 [shape = 'u32[]', space=smem, size = 0x4, offset = 0x4, fixed_abs, tag = 'smem constant byte address 0x4 - core index']
  #allocation1 [shape = 'u32[144,128]{1,0:T(1,128)}', space=vmem, size = 0x12000, scoped, tag = 'internal scratch']
  %s0 = inlined_call_operand.vmem [shape: f32[2,8,16], index: 0, kind: input, shape index: {}]
  %s1 = inlined_call_operand.vmem [shape: bf16[160,48], index: 1, kind: input, shape index: {}]
  %s2 = inlined_call_operand.vmem [shape: f32[32,48], index: 2, kind: input, shape index: {}]
  %s3 = inlined_call_operand.hbm [shape: f32[2,11], index: 3, kind: output, shape index: {}]
  %s4 = sld [smem:[#allocation0]]
  $region22: #{tpu_custom_call.1} parent=0
    _
  %s6 = ssub.s32 1, %s4
  %s7 = scalar_select 0, %s6, %s4
  $region1: #{tpu_custom_call.1} parent=0
    #allocation2 [shape = 'u8[1024]{0}', space=vmem, size = 0x400, scoped, tag = 'output window, operand 0, single buffered']
    #allocation3 [shape = 's32[1]{0}', space=sflag, size = 0x4, scoped, tag = 'scoped memory for tpu_custom_call.1']
    %8 = vsyncpa [#allocation3], 0
    // Predicated region
    $region2: #{tpu_custom_call.1} parent=1 // pred_check
      _
    $region3: #{tpu_custom_call.1} parent=1 // pred_check_branch
      %10 = sbr.rel (0) target = $region5
    $region4: #{tpu_custom_call.1} parent=1 // pred_region
      _
    $region5: #{tpu_custom_call.1} parent=1 // pred_fallthru
      _
    // Predicated region
    $region6: #{tpu_custom_call.1} parent=1 // pred_check
      _
    $region7: #{tpu_custom_call.1} parent=1 // pred_check_branch
      %12 = sbr.rel (0) target = $region9
    $region8: #{tpu_custom_call.1} parent=1 // pred_region
      _
    $region9: #{tpu_custom_call.1} parent=1 // pred_fallthru
      _
    // Predicated region
    $region10: #{tpu_custom_call.1} parent=1 // pred_check
      _
    $region11: #{tpu_custom_call.1} parent=1 // pred_check_branch
      %14 = sbr.rel (0) target = $region13
    $region12: #{tpu_custom_call.1} parent=1 // pred_region
      _
    $region13: #{tpu_custom_call.1} parent=1 // pred_fallthru
      _
    %v16 = vld [vmem:[%s0] sm:$0xff]
    %v17 = vld [vmem:[%s0 + $0x8] sm:$0xff]
    %vm18 = vcmask 130048
    %v19 = vsel %vm18, %v16, 0.0
    %v20 = vrot.slane %v19, 4
    %v21 = vadd.f32 %v19, %v20
    %v22 = vrot.slane %v21, 2
    %v23 = vadd.f32 %v21, %v22
    %v24 = vrot.slane %v23, 1
    %v25 = vadd.f32 %v23, %v24
    %v26 = vsel %vm18, %v17, 0.0
    %v27 = vrot.slane %v26, 4
    %v28 = vadd.f32 %v26, %v27
    %v29 = vrot.slane %v28, 2
    %v30 = vadd.f32 %v28, %v29
    %v31 = vrot.slane %v30, 1
    %v32 = vadd.f32 %v30, %v31
    %v33 = vrcp.pop 8.0
    %v34 = vmul.f32 %v25, %v33
    %v35 = vmul.f32 %v32, %v33
    %v36 = vsub.f32 %v16, %v34
    %v37 = vsub.f32 %v17, %v35
    %v38 = vmul.f32 %v36, %v36
    %v39 = vmul.f32 %v37, %v37
    %v40 = vsel %vm18, %v38, 0.0
    %v41 = vrot.slane %v40, 4
    %v42 = vadd.f32 %v40, %v41
    %v43 = vrot.slane %v42, 2
    %v44 = vadd.f32 %v42, %v43
    %v45 = vrot.slane %v44, 1
    %v46 = vadd.f32 %v44, %v45
    %v47 = vsel %vm18, %v39, 0.0
    %v48 = vrot.slane %v47, 4
    %v49 = vadd.f32 %v47, %v48
    %v50 = vrot.slane %v49, 2
    %v51 = vadd.f32 %v49, %v50
    %v52 = vrot.slane %v51, 1
    %v53 = vadd.f32 %v51, %v52
    %v54 = vmul.f32 %v46, %v33
    %v55 = vmul.f32 %v53, %v33
    %v56 = vadd.f32 %v54, 1e-05
    %v57 = vadd.f32 %v55, 1e-05
    %v58 = vrsqrt.pop %v56
    %v59 = vrsqrt.pop %v57
    %v60 = vmul.f32 %v36, %v58
    %v61 = vmul.f32 %v37, %v59
    %v62 = vld [vmem:[%s1] sm:$0xf]
    %v63 = vld [vmem:[%s1 + $0x4] sm:$0xf]
    %v64 = vld [vmem:[%s1 + $0x8] sm:$0xf]
    %v65 = vld [vmem:[%s1 + $0xc] sm:$0xf]
    %v66 = vld [vmem:[%s1 + $0x10] sm:$0xf]
    %v67 = vld [vmem:[%s1 + $0x14] sm:$0xf]
    %v68 = vld [vmem:[%s1 + $0x18] sm:$0xf]
    %v69 = vld [vmem:[%s1 + $0x1c] sm:$0xf]
    %v70 = vld [vmem:[%s1 + $0x20] sm:$0xf]
    %v71 = vld [vmem:[%s1 + $0x24] sm:$0xf]
    %v72 = vld [vmem:[%s1 + $0x28] sm:$0xf]
    %v73 = vld [vmem:[%s1 + $0x2c] sm:$0xf]
    %v74 = vld [vmem:[%s1 + $0x30] sm:$0xf]
    %v75 = vld [vmem:[%s1 + $0x34] sm:$0xf]
    %v76 = vld [vmem:[%s1 + $0x38] sm:$0xf]
    %v77 = vld [vmem:[%s1 + $0x3c] sm:$0xf]
    %v78 = vld [vmem:[%s1 + $0x40] sm:$0xf]
    %v79 = vld [vmem:[%s1 + $0x44] sm:$0xf]
    %v80 = vld [vmem:[%s1 + $0x48] sm:$0xf]
    %v81 = vld [vmem:[%s1 + $0x4c] sm:$0xf]
    %v82 = vld [vmem:[%s2 + $0x8] sm:$0x1]
    %v83 = vld [vmem:[%s2 + $0x10] sm:$0x1]
    %v84 = vld [vmem:[%s2 + $0x18] sm:$0x1]
    %v85 = vld [vmem:[%s2] sm:$0x3]
    %v86 = vmul.f32 %v60, 4.0
    %v87 = vmul.f32 %v61, 4.0
    %v88 = vlaneseq
    %v89 = vshrl.u32 %v88, 7
    %v90 = vsub.s32 0, %v89
    %v91 = vrot.slane %v85, %v90
    %v92 = vmul.f32 %v91, 0.0
    %v94 = vrot.slane %v92, 1
    %v97 = vadd.f32 %v86, %v92
    %v98 = vadd.f32 %v87, %v94
    %v99 = vlaneseq
    %v100 = vshrl.u32 %v99, 7
    %v101 = vsub.s32 1, %v100
    %v102 = vrot.slane %v85, %v101
    %v103 = vmul.f32 %v102, 0.0
    %v105 = vrot.slane %v103, 1
    %v108 = vadd.f32 %v97, %v103
    %v109 = vadd.f32 %v98, %v105
    %v110 = vmax.f32 %v108, -1.0
    %v111 = vmax.f32 %v109, -1.0
    %v112 = vmin.f32 %v110, 1.0
    %v113 = vmin.f32 %v111, 1.0
    %v116 = vrot.slane %v113, 7
    %vm117 = vcmask 1041409
    %v118 = vsel %vm117, %v116, %v112
    %119 = vrot.lane.b32.xlu0 %v118, 127
    %v120 = vpop.permute.xlu0 %119
    %122 = vrot.lane.b32.xlu0 %v118, 15
    %v123 = vpop.permute.xlu0 %122
    %vm125 = vcmask 121856
    %v126 = vsel %vm125, %v120, %v123
    %v127 = vmul.f32 %v126, %v91
    %v129 = vrot.slane %v127, 7
    %v132 = vadd.f32 %v86, %v129
    %v133 = vadd.f32 %v87, %v127
    %134 = vrot.lane.b32.xlu0 %v118, 126
    %v135 = vpop.permute.xlu0 %134
    %137 = vrot.lane.b32.xlu0 %v118, 14
    %v138 = vpop.permute.xlu0 %137
    %vm140 = vcmask 113664
    %v141 = vsel %vm140, %v135, %v138
    %v142 = vmul.f32 %v141, %v102
    %v144 = vrot.slane %v142, 7
    %v147 = vadd.f32 %v132, %v144
    %v148 = vadd.f32 %v133, %v142
    %v149 = vmax.f32 %v147, -1.0
    %v150 = vmax.f32 %v148, -1.0
    %v151 = vmin.f32 %v149, 1.0
    %v152 = vmin.f32 %v150, 1.0
    %v155 = vrot.slane %v152, 7
    %vm156 = vcmask 1042434
    %v157 = vsel %vm156, %v155, %v151
    %158 = vrot.lane.b32.xlu0 %v157, 127
    %v159 = vpop.permute.xlu0 %158
    %161 = vrot.lane.b32.xlu0 %v157, 15
    %v162 = vpop.permute.xlu0 %161
    %v164 = vsel %vm125, %v159, %v162
    %v165 = vmul.f32 %v164, %v91
    %v167 = vrot.slane %v165, 7
    %v170 = vadd.f32 %v86, %v167
    %v171 = vadd.f32 %v87, %v165
    %172 = vrot.lane.b32.xlu0 %v157, 126
    %v173 = vpop.permute.xlu0 %172
    %175 = vrot.lane.b32.xlu0 %v157, 14
    %v176 = vpop.permute.xlu0 %175
    %v178 = vsel %vm140, %v173, %v176
    %v179 = vmul.f32 %v178, %v102
    %v181 = vrot.slane %v179, 7
    %v184 = vadd.f32 %v170, %v181
    %v185 = vadd.f32 %v171, %v179
    %v186 = vmax.f32 %v184, -1.0
    %v187 = vmax.f32 %v185, -1.0
    %v188 = vmin.f32 %v186, 1.0
    %v189 = vmin.f32 %v187, 1.0
    %v192 = vrot.slane %v189, 7
    %vm193 = vcmask 1043459
    %v194 = vsel %vm193, %v192, %v188
    %195 = vrot.lane.b32.xlu0 %v194, 127
    %v196 = vpop.permute.xlu0 %195
    %198 = vrot.lane.b32.xlu0 %v194, 15
    %v199 = vpop.permute.xlu0 %198
    %v201 = vsel %vm125, %v196, %v199
    %v202 = vmul.f32 %v201, %v91
    %v204 = vrot.slane %v202, 7
    %v207 = vadd.f32 %v86, %v204
    %v208 = vadd.f32 %v87, %v202
    %209 = vrot.lane.b32.xlu0 %v194, 126
    %v210 = vpop.permute.xlu0 %209
    %212 = vrot.lane.b32.xlu0 %v194, 14
    %v213 = vpop.permute.xlu0 %212
    %v215 = vsel %vm140, %v210, %v213
    %v216 = vmul.f32 %v215, %v102
    %v218 = vrot.slane %v216, 7
    %v221 = vadd.f32 %v207, %v218
    %v222 = vadd.f32 %v208, %v216
    %v223 = vmax.f32 %v221, -1.0
    %v224 = vmax.f32 %v222, -1.0
    %v225 = vmin.f32 %v223, 1.0
    %v226 = vmin.f32 %v224, 1.0
    %v229 = vrot.slane %v226, 7
    %vm230 = vcmask 1044484
    %v231 = vsel %vm230, %v229, %v225
    %232 = vrot.lane.b32.xlu0 %v231, 127
    %v233 = vpop.permute.xlu0 %232
    %235 = vrot.lane.b32.xlu0 %v231, 15
    %v236 = vpop.permute.xlu0 %235
    %v238 = vsel %vm125, %v233, %v236
    %v239 = vmul.f32 %v238, %v91
    %v241 = vrot.slane %v239, 7
    %v244 = vadd.f32 %v86, %v241
    %v245 = vadd.f32 %v87, %v239
    %246 = vrot.lane.b32.xlu0 %v231, 126
    %v247 = vpop.permute.xlu0 %246
    %249 = vrot.lane.b32.xlu0 %v231, 14
    %v250 = vpop.permute.xlu0 %249
    %v252 = vsel %vm140, %v247, %v250
    %v253 = vmul.f32 %v252, %v102
    %v255 = vrot.slane %v253, 7
    %v258 = vadd.f32 %v244, %v255
    %v259 = vadd.f32 %v245, %v253
    %v260 = vmax.f32 %v258, -1.0
    %v261 = vmax.f32 %v259, -1.0
    %v262 = vmin.f32 %v260, 1.0
    %v263 = vmin.f32 %v261, 1.0
    %v266 = vrot.slane %v263, 7
    %vm267 = vcmask 1045509
    %v268 = vsel %vm267, %v266, %v262
    %269 = vrot.lane.b32.xlu0 %v268, 127
    %v270 = vpop.permute.xlu0 %269
    %272 = vrot.lane.b32.xlu0 %v268, 15
    %v273 = vpop.permute.xlu0 %272
    %v275 = vsel %vm125, %v270, %v273
    %v276 = vmul.f32 %v275, %v91
    %v278 = vrot.slane %v276, 7
    %v281 = vadd.f32 %v86, %v278
    %v282 = vadd.f32 %v87, %v276
    %283 = vrot.lane.b32.xlu0 %v268, 126
    %v284 = vpop.permute.xlu0 %283
    %286 = vrot.lane.b32.xlu0 %v268, 14
    %v287 = vpop.permute.xlu0 %286
    %v289 = vsel %vm140, %v284, %v287
    %v290 = vmul.f32 %v289, %v102
    %v292 = vrot.slane %v290, 7
    %v295 = vadd.f32 %v281, %v292
    %v296 = vadd.f32 %v282, %v290
    %v297 = vmax.f32 %v295, -1.0
    %v298 = vmax.f32 %v296, -1.0
    %v299 = vmin.f32 %v297, 1.0
    %v300 = vmin.f32 %v298, 1.0
    %v303 = vrot.slane %v300, 7
    %vm304 = vcmask 1046534
    %v305 = vsel %vm304, %v303, %v299
    %306 = vrot.lane.b32.xlu0 %v305, 127
    %v307 = vpop.permute.xlu0 %306
    %309 = vrot.lane.b32.xlu0 %v305, 15
    %v310 = vpop.permute.xlu0 %309
    %v312 = vsel %vm125, %v307, %v310
    %v313 = vmul.f32 %v312, %v91
    %v315 = vrot.slane %v313, 7
    %v318 = vadd.f32 %v86, %v315
    %v319 = vadd.f32 %v87, %v313
    %320 = vrot.lane.b32.xlu0 %v305, 126
    %v321 = vpop.permute.xlu0 %320
    %323 = vrot.lane.b32.xlu0 %v305, 14
    %v324 = vpop.permute.xlu0 %323
    %v326 = vsel %vm140, %v321, %v324
    %v327 = vmul.f32 %v326, %v102
    %v329 = vrot.slane %v327, 7
    %v332 = vadd.f32 %v318, %v329
    %v333 = vadd.f32 %v319, %v327
    %v334 = vmax.f32 %v332, -1.0
    %v335 = vmax.f32 %v333, -1.0
    %v336 = vmin.f32 %v334, 1.0
    %v337 = vmin.f32 %v335, 1.0
    %v340 = vrot.slane %v337, 7
    %vm341 = vcmask 1047559
    %v342 = vsel %vm341, %v340, %v336
    %343 = vrot.lane.b32.xlu0 %v342, 127
    %v344 = vpop.permute.xlu0 %343
    %346 = vrot.lane.b32.xlu0 %v342, 15
    %v347 = vpop.permute.xlu0 %346
    %v349 = vsel %vm125, %v344, %v347
    %v350 = vmul.f32 %v349, %v91
    %v352 = vrot.slane %v350, 7
    %v355 = vadd.f32 %v86, %v352
    %v356 = vadd.f32 %v87, %v350
    %357 = vrot.lane.b32.xlu0 %v342, 126
    %v358 = vpop.permute.xlu0 %357
    %360 = vrot.lane.b32.xlu0 %v342, 14
    %v361 = vpop.permute.xlu0 %360
    %v363 = vsel %vm140, %v358, %v361
    %v364 = vmul.f32 %v363, %v102
    %v366 = vrot.slane %v364, 7
    %v369 = vadd.f32 %v355, %v366
    %v370 = vadd.f32 %v356, %v364
    %v371 = vmax.f32 %v369, -1.0
    %v372 = vmax.f32 %v370, -1.0
    %v373 = vmin.f32 %v371, 1.0
    %v374 = vmin.f32 %v372, 1.0
    %vm375 = vcmask 1040384
    %v376 = vsel %vm375, %v112, %v151
    %v377 = vsel %vm375, %v113, %v152
    %vm378 = vcmask 1041408
    %v379 = vsel %vm378, %v376, %v188
    %v380 = vsel %vm378, %v377, %v189
    %vm381 = vcmask 1042432
    %v382 = vsel %vm381, %v379, %v225
    %v383 = vsel %vm381, %v380, %v226
    %vm384 = vcmask 1043456
    %v385 = vsel %vm384, %v382, %v262
    %v386 = vsel %vm384, %v383, %v263
    %vm387 = vcmask 1044480
    %v388 = vsel %vm387, %v385, %v299
    %v389 = vsel %vm387, %v386, %v300
    %vm390 = vcmask 1045504
    %v391 = vsel %vm390, %v388, %v336
    %v392 = vsel %vm390, %v389, %v337
    %vm393 = vcmask 1046528
    %v394 = vsel %vm393, %v391, %v373
    %v395 = vsel %vm393, %v392, %v374
    %v396 = vpack.c.bf16 %v61, %v60
    %v397 = vlaneseq
    %v398 = vshrl.u32 %v397, 7
    %v399 = vsub.s32 0, %v398
    %v400 = vrot.slane %v82, %v399
    %v403 = vunpack.c.l.b16 %v62
    %v404 = vunpack.c.l.b16 %v63
    %v405 = vpack.c.b16 %v404, %v403
    %v408 = vsel %vm18, %v396, 0
    %410 = vmatprep.subr.bf16.mxu0 0
    %411 = vmatpush1.bf16.msra.mxu0 %v405
    %412 = vmatprep.subr.bf16.mxu0 0
    %413 = vmatpush1.bf16.msra.mxu0 0
    %414 = vmatprep.subr.bf16.mxu0 0
    %415 = vmatpush1.bf16.msra.mxu0 0
    %416 = vmatprep.subr.bf16.mxu0 0
    %417 = vmatpush1.bf16.msra.mxu0 0
    %418 = vmatprep.subr.bf16.mxu0 0
    %419 = vmatpush1.bf16.msra.mxu0 0
    %420 = vmatprep.subr.bf16.mxu0 0
    %421 = vmatpush1.bf16.msra.mxu0 0
    %422 = vmatprep.subr.bf16.mxu0 0
    %423 = vmatpush1.bf16.msra.mxu0 0
    %424 = vmatprep.subr.bf16.mxu0 0
    %425 = vmatpush1.bf16.msra.mxu0 0
    %426 = vmatprep.subr.bf16.mxu0 0
    %427 = vmatpush1.bf16.msra.mxu0 0
    %428 = vmatprep.subr.bf16.mxu0 0
    %429 = vmatpush1.bf16.msra.mxu0 0
    %430 = vmatprep.subr.bf16.mxu0 0
    %431 = vmatpush1.bf16.msra.mxu0 0
    %432 = vmatprep.subr.bf16.mxu0 0
    %433 = vmatpush1.bf16.msra.mxu0 0
    %434 = vmatprep.subr.bf16.mxu0 0
    %435 = vmatpush1.bf16.msra.mxu0 0
    %436 = vmatprep.subr.bf16.mxu0 0
    %437 = vmatpush1.bf16.msra.mxu0 0
    %438 = vmatprep.subr.bf16.mxu0 0
    %439 = vmatpush1.bf16.msra.mxu0 0
    %440 = vmatprep.subr.bf16.mxu0 0
    %441 = vmatpush1.bf16.msra.mxu0 0
    %442 = vmatprep.mubr.bf16.mxu0 0
    %443 = vmatmul.mubr.bf16.gmra.mrb[0].mxu0 %v408
    %v444 = vpop.f32.mrb[0].mxu0
    %v445 = vadd.f32 %v400, %v444
    %v446 = vpop.f32.mrb[0].mxu0
    %v447 = vpop.f32.mrb[0].mxu0
    %v448 = vadd.f32 %v400, %v447
    %v449 = vpop.f32.mrb[0].mxu0
    %450 = vdwg.mxu0
    %vm451 = vcmp.gt.f32.partialorder %v445, 0.0
    %vm452 = vcmp.gt.f32.partialorder %v448, 0.0
    %v453 = vmul.f32 %v445, 0.0078125
    %v454 = vmul.f32 %v448, 0.0078125
    %v455 = vsel %vm451, %v445, %v453
    %v456 = vsel %vm452, %v448, %v454
    %v457 = vpack.c.bf16 %v456, %v455
    %v458 = vlaneseq
    %v459 = vshrl.u32 %v458, 7
    %v460 = vsub.s32 0, %v459
    %v461 = vrot.slane %v83, %v460
    %v468 = vunpack.c.l.b16 %v64
    %v469 = vunpack.c.l.b16 %v65
    %v470 = vunpack.c.l.b16 %v66
    %v471 = vunpack.c.l.b16 %v67
    %v472 = vunpack.c.l.b16 %v68
    %v473 = vunpack.c.l.b16 %v69
    %v474 = vpack.c.b16 %v469, %v468
    %v475 = vpack.c.b16 %v471, %v470
    %v476 = vpack.c.b16 %v473, %v472
    %vm480 = vcmask 392192
    %v482 = vsel %vm480, %v457, 0
    %484 = vmatprep.subr.bf16.mxu0 0
    %485 = vmatpush1.bf16.msra.mxu0 %v474
    %486 = vmatprep.subr.bf16.mxu0 0
    %487 = vmatpush1.bf16.msra.mxu0 %v475
    %488 = vmatprep.subr.bf16.mxu0 0
    %489 = vmatpush1.bf16.msra.mxu0 %v476
    %490 = vmatprep.subr.bf16.mxu0 0
    %491 = vmatpush1.bf16.msra.mxu0 0
    %492 = vmatprep.subr.bf16.mxu0 0
    %493 = vmatpush1.bf16.msra.mxu0 0
    %494 = vmatprep.subr.bf16.mxu0 0
    %495 = vmatpush1.bf16.msra.mxu0 0
    %496 = vmatprep.subr.bf16.mxu0 0
    %497 = vmatpush1.bf16.msra.mxu0 0
    %498 = vmatprep.subr.bf16.mxu0 0
    %499 = vmatpush1.bf16.msra.mxu0 0
    %500 = vmatprep.subr.bf16.mxu0 0
    %501 = vmatpush1.bf16.msra.mxu0 0
    %502 = vmatprep.subr.bf16.mxu0 0
    %503 = vmatpush1.bf16.msra.mxu0 0
    %504 = vmatprep.subr.bf16.mxu0 0
    %505 = vmatpush1.bf16.msra.mxu0 0
    %506 = vmatprep.subr.bf16.mxu0 0
    %507 = vmatpush1.bf16.msra.mxu0 0
    %508 = vmatprep.subr.bf16.mxu0 0
    %509 = vmatpush1.bf16.msra.mxu0 0
    %510 = vmatprep.subr.bf16.mxu0 0
    %511 = vmatpush1.bf16.msra.mxu0 0
    %512 = vmatprep.subr.bf16.mxu0 0
    %513 = vmatpush1.bf16.msra.mxu0 0
    %514 = vmatprep.subr.bf16.mxu0 0
    %515 = vmatpush1.bf16.msra.mxu0 0
    %516 = vmatprep.mubr.bf16.mxu0 0
    %517 = vmatmul.mubr.bf16.gmra.mrb[0].mxu0 %v482
    %v518 = vpop.f32.mrb[0].mxu0
    %v519 = vadd.f32 %v461, %v518
    %v520 = vpop.f32.mrb[0].mxu0
    %v521 = vpop.f32.mrb[0].mxu0
    %v522 = vadd.f32 %v461, %v521
    %v523 = vpop.f32.mrb[0].mxu0
    %524 = vdwg.mxu0
    %vm525 = vcmp.gt.f32.partialorder %v519, 0.0
    %vm526 = vcmp.gt.f32.partialorder %v522, 0.0
    %v527 = vmul.f32 %v519, 0.0078125
    %v528 = vmul.f32 %v522, 0.0078125
    %v529 = vsel %vm525, %v519, %v527
    %v530 = vsel %vm526, %v522, %v528
    %vm531 = vcmp.gt.f32.partialorder %v394, 0.0
    %vm532 = vcmp.gt.f32.partialorder %v395, 0.0
    %v533 = vmul.f32 %v394, 0.0078125
    %v534 = vmul.f32 %v395, 0.0078125
    %v535 = vsel %vm531, %v394, %v533
    %v536 = vsel %vm532, %v395, %v534
    %539 = vrot.lane.b32.xlu0 %v60, 16
    %v540 = vpop.permute.xlu0 %539
    %541 = vrot.lane.b32.xlu0 %v61, 16
    %v542 = vpop.permute.xlu0 %541
    %547 = vrot.lane.b32.xlu0 %v529, 32
    %v548 = vpop.permute.xlu0 %547
    %549 = vrot.lane.b32.xlu0 %v530, 32
    %v550 = vpop.permute.xlu0 %549
    %555 = vrot.lane.b32.xlu0 %v394, 64
    %v556 = vpop.permute.xlu0 %555
    %557 = vrot.lane.b32.xlu0 %v395, 64
    %v558 = vpop.permute.xlu0 %557
    %563 = vrot.lane.b32.xlu0 %v535, 80
    %v564 = vpop.permute.xlu0 %563
    %565 = vrot.lane.b32.xlu0 %v536, 80
    %v566 = vpop.permute.xlu0 %565
    %v569 = vsel %vm18, %v16, %v540
    %v570 = vsel %vm18, %v17, %v542
    %vm571 = vcmask 261120
    %v572 = vsel %vm571, %v569, %v548
    %v573 = vsel %vm571, %v570, %v550
    %vm574 = vcmask 523264
    %v575 = vsel %vm574, %v572, %v556
    %v576 = vsel %vm574, %v573, %v558
    %vm577 = vcmask 654336
    %v578 = vsel %vm577, %v575, %v564
    %v579 = vsel %vm577, %v576, %v566
    %v580 = vpack.c.bf16 %v579, %v578
    %v581 = vlaneseq
    %v582 = vshrl.u32 %v581, 7
    %v583 = vsub.s32 0, %v582
    %v584 = vrot.slane %v84, %v583
    %v597 = vunpack.c.l.b16 %v70
    %v598 = vunpack.c.l.b16 %v71
    %v599 = vunpack.c.l.b16 %v72
    %v600 = vunpack.c.l.b16 %v73
    %v601 = vunpack.c.l.b16 %v74
    %v602 = vunpack.c.l.b16 %v75
    %v603 = vunpack.c.l.b16 %v76
    %v604 = vunpack.c.l.b16 %v77
    %v605 = vunpack.c.l.b16 %v78
    %v606 = vunpack.c.l.b16 %v79
    %v607 = vunpack.c.l.b16 %v80
    %v608 = vunpack.c.l.b16 %v81
    %v609 = vpack.c.b16 %v598, %v597
    %v610 = vpack.c.b16 %v600, %v599
    %v611 = vpack.c.b16 %v602, %v601
    %v612 = vpack.c.b16 %v604, %v603
    %v613 = vpack.c.b16 %v606, %v605
    %v614 = vpack.c.b16 %v608, %v607
    %vm621 = vcmask 785408
    %v623 = vsel %vm621, %v580, 0
    %625 = vmatprep.subr.bf16.mxu0 0
    %626 = vmatpush1.bf16.msra.mxu0 %v609
    %627 = vmatprep.subr.bf16.mxu0 0
    %628 = vmatpush1.bf16.msra.mxu0 %v610
    %629 = vmatprep.subr.bf16.mxu0 0
    %630 = vmatpush1.bf16.msra.mxu0 %v611
    %631 = vmatprep.subr.bf16.mxu0 0
    %632 = vmatpush1.bf16.msra.mxu0 %v612
    %633 = vmatprep.subr.bf16.mxu0 0
    %634 = vmatpush1.bf16.msra.mxu0 %v613
    %635 = vmatprep.subr.bf16.mxu0 0
    %636 = vmatpush1.bf16.msra.mxu0 %v614
    %637 = vmatprep.subr.bf16.mxu0 0
    %638 = vmatpush1.bf16.msra.mxu0 0
    %639 = vmatprep.subr.bf16.mxu0 0
    %640 = vmatpush1.bf16.msra.mxu0 0
    %641 = vmatprep.subr.bf16.mxu0 0
    %642 = vmatpush1.bf16.msra.mxu0 0
    %643 = vmatprep.subr.bf16.mxu0 0
    %644 = vmatpush1.bf16.msra.mxu0 0
    %645 = vmatprep.subr.bf16.mxu0 0
    %646 = vmatpush1.bf16.msra.mxu0 0
    %647 = vmatprep.subr.bf16.mxu0 0
    %648 = vmatpush1.bf16.msra.mxu0 0
    %649 = vmatprep.subr.bf16.mxu0 0
    %650 = vmatpush1.bf16.msra.mxu0 0
    %651 = vmatprep.subr.bf16.mxu0 0
    %652 = vmatpush1.bf16.msra.mxu0 0
    %653 = vmatprep.subr.bf16.mxu0 0
    %654 = vmatpush1.bf16.msra.mxu0 0
    %655 = vmatprep.subr.bf16.mxu0 0
    %656 = vmatpush1.bf16.msra.mxu0 0
    %657 = vmatprep.mubr.bf16.mxu0 0
    %658 = vmatmul.mubr.bf16.gmra.mrb[0].mxu0 %v623
    %v659 = vpop.f32.mrb[0].mxu0
    %v660 = vadd.f32 %v584, %v659
    %v661 = vpop.f32.mrb[0].mxu0
    %v662 = vpop.f32.mrb[0].mxu0
    %v663 = vadd.f32 %v584, %v662
    %v664 = vpop.f32.mrb[0].mxu0
    %665 = vdwg.mxu0
    %vm666 = vcmask 89088
    %v667 = vsel %vm666, %v660, 0.0
    %v668 = vsel %vm666, %v663, 0.0
    %v669 = vadd.f32 %v667, %v668
    %v670 = vrot.slane %v669, 4
    %v671 = vadd.f32 %v669, %v670
    %v672 = vrot.slane %v671, 2
    %v673 = vadd.f32 %v671, %v672
    %v674 = vrot.slane %v673, 1
    %v675 = vadd.f32 %v673, %v674
    %v676 = vrcp.pop 16.0
    %v677 = vmul.f32 %v675, %v676
    %v678 = vsub.f32 %v660, %v677
    %v679 = vsub.f32 %v663, %v677
    %v680 = vmul.f32 %v678, %v678
    %v681 = vmul.f32 %v679, %v679
    %v682 = vsel %vm666, %v680, 0.0
    %v683 = vsel %vm666, %v681, 0.0
    %v684 = vadd.f32 %v682, %v683
    %v685 = vrot.slane %v684, 4
    %v686 = vadd.f32 %v684, %v685
    %v687 = vrot.slane %v686, 2
    %v688 = vadd.f32 %v686, %v687
    %v689 = vrot.slane %v688, 1
    %v690 = vadd.f32 %v688, %v689
    %v691 = vmul.f32 %v690, %v676
    %v692 = vadd.f32 %v691, 1e-05
    %v693 = vrsqrt.pop %v692
    %v694 = vmul.f32 %v678, %v693
    %v695 = vmul.f32 %v679, %v693
    %vm696 = vcmp.gt.f32.partialorder %v694, 0.0
    %vm697 = vcmp.gt.f32.partialorder %v695, 0.0
    %v698 = vmul.f32 %v694, 0.0078125
    %v699 = vmul.f32 %v695, 0.0078125
    %v700 = vsel %vm696, %v694, %v698
    %v701 = vsel %vm697, %v695, %v699
    %v702 = vsel %vm666, %v700, 0.0
    %v703 = vrot.slane %v702, 4
    %v704 = vadd.f32 %v702, %v703
    %v705 = vrot.slane %v704, 2
    %v706 = vadd.f32 %v704, %v705
    %v707 = vrot.slane %v706, 1
    %v708 = vadd.f32 %v706, %v707
    %v709 = vsel %vm666, %v701, 0.0
    %v710 = vrot.slane %v709, 4
    %v711 = vadd.f32 %v709, %v710
    %v712 = vrot.slane %v711, 2
    %v713 = vadd.f32 %v711, %v712
    %v714 = vrot.slane %v713, 1
    %v715 = vadd.f32 %v713, %v714
    %v716 = vmul.f32 %v708, %v33
    %v717 = vmul.f32 %v715, %v33
    %v720 = vsel %vm117, %v717, %v716
    %vm722 = vcmask 82944
    %723 = vst.msk [vmem:[#allocation2] sm:$0x3] %vm722, %v720
    // Predicated region
    $region14: #{tpu_custom_call.1} parent=1 // pred_check
      _
    $region15: #{tpu_custom_call.1} parent=1 // pred_check_branch
      %725 = sbr.rel (0) target = $region17
    $region16: #{tpu_custom_call.1} parent=1 // pred_region
      %s727 = ssub.s32 32, 32
      %728 = vsyncadd [#allocation3], %s727
      %s730 = sshll.u32 [#allocation2], 4
      %s731 = int_to_ptr.vmem [resolvable:$true] %s730
      %733 = dma.vmem_to_hbm [thread:$0]  %s731, 32, %s3, [#allocation3]
    $region17: #{tpu_custom_call.1} parent=1 // pred_fallthru
      _
    // Predicated region
    $region18: #{tpu_custom_call.1} parent=1 // pred_check
      _
    $region19: #{tpu_custom_call.1} parent=1 // pred_check_branch
      %735 = sbr.rel (0) target = $region21
    $region20: #{tpu_custom_call.1} parent=1 // pred_region
      %736 = dma.done [#allocation3], 32
    $region21: #{tpu_custom_call.1} parent=1 // pred_fallthru
      _
    %737 = vsyncpa [#allocation3], 1

</llo_original>
